<compile_context>
chip_gen: v6e
topology: v6e:2x2x1
jax: 0.10.0
libtpu: 0.0.40
codegen_flags: <defaults>
</compile_context>

<pallas_src>
import functools

import jax
import jax.numpy as jnp
from jax.experimental import pallas as pl
from jax.experimental.pallas import tpu as pltpu


def _round_up(n, m):
    return ((n + m - 1) // m) * m


# Elementwise activations supported by the module (all map to VPU/EUP ops).
# TODO(synk): PReLU / RReLU need a learnable / stochastic slope parameter and
# are not wired through this inference kernel (module default is 'relu').
_ACTIVATIONS = {
    "relu": lambda v: jnp.maximum(v, 0.0),
    "gelu": jax.nn.gelu,
    "elu": jax.nn.elu,
    "leakyrelu": lambda v: jax.nn.leaky_relu(v, negative_slope=0.01),
    "mish": lambda v: v * jnp.tanh(jax.nn.softplus(v)),
}


def outlayer_kernel(x_ref, w1_ref, b1_ref, w2_ref, b2_ref, y_ref, *, act):
    """y = act(x @ W1 + b1) @ W2 + b2.  Dropout(p=0) is the identity at eval."""
    # On-chip cast of the activation tile to the weight compute dtype (bf16):
    # hidden under the DMA, and avoids an extra HBM round trip in the wrapper.
    x = x_ref[...].astype(w1_ref.dtype)
    # fc_1: MXU matmul with f32 accumulation; bias + activation stay f32
    # (v5e VPU has no bf16 ALU path; this VPU work hides under MXU/DMA).
    h = jnp.dot(x, w1_ref[...], preferred_element_type=jnp.float32)
    h = act(h + b1_ref[...])
    # fc_2: cast back to bf16 so the second matmul also uses the MXU fast path.
    h = h.astype(w2_ref.dtype)
    y = jnp.dot(h, w2_ref[...], preferred_element_type=jnp.float32)
    y_ref[...] = (y + b2_ref[...]).astype(y_ref.dtype)


def prepare_out_layer_params(w1, b1, w2, b2, *, compute_dtype=jnp.bfloat16):
    """One-time parameter prep -- call once and reuse across forward calls.

    w1: [d_in, d_hidden], b1: [d_hidden] or [1, d_hidden]
    w2: [d_hidden, d_out], b2: [d_out]  or [1, d_out]
    On v7x, compute_dtype may be an fp8 dtype (e.g. jnp.float8_e4m3fn) to
    halve weight HBM/VMEM footprint; keep bf16 on v5e/v6e.
    """
    return (jnp.asarray(w1, compute_dtype),
            jnp.asarray(b1, jnp.float32).reshape(1, -1),
            jnp.asarray(w2, compute_dtype),
            jnp.asarray(b2, jnp.float32).reshape(1, -1))


def out_layer(x, params, *, activation="relu", tile_b=512, out_dtype=None,
              single_buffer_weights=True):
    """Forward pass of OutLayer via a Pallas TPU kernel.

    x: [B, d_in]; params from prepare_out_layer_params(); returns [B, d_out].
    """
    w1, b1, w2, b2 = params
    B, d_in = x.shape
    d_hidden, d_out = w2.shape
    assert w1.shape == (d_in, d_hidden) and b1.shape == (1, d_hidden)
    assert b2.shape == (1, d_out)
    out_dtype = x.dtype if out_dtype is None else jnp.dtype(out_dtype)
    act = _ACTIVATIONS[activation]

    # ---- Batch tiling: the only grid axis (weights stay resident) ----------
    if B <= 128:
        tb = B                                     # one step; nothing to shard
    else:
        # At least 2 steps so the "parallel" batch axis shards across both
        # TensorCores on v7x; cap at tile_b rows per step.
        tb = min(max(tile_b, 8), _round_up(pl.cdiv(B, 2), 8))
    grid = (pl.cdiv(B, tb),)   # ragged last tile: rows are independent and
                               # out-of-bounds output rows are masked on store.

    # ---- VMEM budget / fit check --------------------------------------------
    try:
        vmem_cap = int(pltpu.get_tpu_info().vmem_capacity_bytes)
    except Exception:
        vmem_cap = 64 << 20                        # v7x has the smallest VMEM
    vmem_ceiling = (vmem_cap * 7) // 8             # headroom for compiler scratch

    w_itemsize = jnp.dtype(w1.dtype).itemsize
    x_itemsize = jnp.dtype(x.dtype).itemsize
    y_itemsize = jnp.dtype(out_dtype).itemsize
    weight_bytes = (w1.size + w2.size) * w_itemsize + (b1.size + b2.size) * 4
    io_bytes = 2 * tb * (d_in * x_itemsize + d_out * y_itemsize)  # 2x: dbl-buffered tiles

    cost = pl.CostEstimate(
        flops=2 * B * (d_in * d_hidden + d_hidden * d_out),
        transcendentals=0,
        bytes_accessed=(B * d_in * x_itemsize + weight_bytes
                        + B * d_out * y_itemsize))

    out_shape = jax.ShapeDtypeStruct((B, d_out), out_dtype)
    kernel = functools.partial(outlayer_kernel, act=act)

    def run(single_buffer):
        n_wbuf = 1 if single_buffer else 2         # compiler buffers per weight spec
        vmem_need = n_wbuf * weight_bytes + io_bytes
        if vmem_need > vmem_ceiling:
            raise ValueError(
                f"Resident-weight OutLayer kernel needs ~{vmem_need} B VMEM but "
                f"only ~{vmem_ceiling} B is available on this TPU generation; "
                "tile d_hidden over a second ('arbitrary') grid axis with an "
                "f32 accumulator instead.")
        vmem_limit = int(min(vmem_ceiling, max(16 << 20, 2 * vmem_need)))

        def const_spec(shape):
            # Constant index_map -> resident across the batch grid.  With
            # single_buffer we ask Pallas not to double-buffer the weights.
            if single_buffer:
                return pl.BlockSpec(shape, lambda i: (0, 0),
                                    pipeline_mode=pl.Buffered(1))
            return pl.BlockSpec(shape, lambda i: (0, 0))

        return pl.pallas_call(
            kernel,
            out_shape=out_shape,
            grid_spec=pltpu.PrefetchScalarGridSpec(
                num_scalar_prefetch=0,
                grid=grid,
                in_specs=[
                    pl.BlockSpec((tb, d_in), lambda i: (i, 0)),   # x batch tile
                    const_spec((d_in, d_hidden)),                 # W1 (resident)
                    const_spec((1, d_hidden)),                    # b1 (resident)
                    const_spec((d_hidden, d_out)),                # W2 (resident)
                    const_spec((1, d_out)),                       # b2 (resident)
                ],
                out_specs=pl.BlockSpec((tb, d_out), lambda i: (i, 0)),
            ),
            compiler_params=pltpu.CompilerParams(
                dimension_semantics=("parallel",),
                vmem_limit_bytes=vmem_limit,
            ),
            cost_estimate=cost,
        )(x, w1, b1, w2, b2)

    if single_buffer_weights:
        try:
            return run(True)
        except Exception:
            # pl.Buffered(1) (single-buffered resident weights) not supported
            # by this jax/libtpu build -> fall back to default double buffering.
            return run(False)
    return run(False)


if __name__ == "__main__":
    # Small shapes consistent with the module: x is [batch, d_in].
    B, d_in, d_hidden, d_out = 16, 32, 64, 16
    bias_init = 0.0  # nn.init.constant_(fc_2.bias, bias)

    key = jax.random.PRNGKey(0)
    kx, kw1, kb1, kw2, kx2 = jax.random.split(key, 5)

    x = jax.random.normal(kx, (B, d_in), dtype=jnp.float32)

    # Mimic PyTorch's uniform(-1/sqrt(fan_in), +1/sqrt(fan_in)) init.
    lim1 = 1.0 / (d_in ** 0.5)
    w1 = jax.random.uniform(kw1, (d_in, d_hidden), minval=-lim1, maxval=lim1,
                            dtype=jnp.float32)
    b1 = jax.random.uniform(kb1, (1, d_hidden), minval=-lim1, maxval=lim1,
                            dtype=jnp.float32)
    lim2 = 1.0 / (d_hidden ** 0.5)
    w2 = jax.random.uniform(kw2, (d_hidden, d_out), minval=-lim2, maxval=lim2,
                            dtype=jnp.float32)
    b2 = jnp.full((1, d_out), bias_init, dtype=jnp.float32)

    # One-time parameter prep (hoisted out of the per-call path).
    params = prepare_out_layer_params(w1, b1, w2, b2)

    def bf16_ref(xv):
        xb, w1b, w2b = (a.astype(jnp.bfloat16) for a in (xv, w1, w2))
        h = jnp.maximum(jnp.dot(xb, w1b, preferred_element_type=jnp.float32) + b1, 0.0)
        return jnp.dot(h.astype(jnp.bfloat16), w2b,
                       preferred_element_type=jnp.float32) + b2

    def f32_ref(xv):
        return jnp.maximum(xv @ w1 + b1, 0.0) @ w2 + b2   # Dropout(p=0) == identity

    # --- Single-step path (whole batch in one grid step) ---------------------
    y = jax.block_until_ready(out_layer(x, params))
    assert y.shape == (B, d_out) and y.dtype == x.dtype
    assert jnp.allclose(y, bf16_ref(x), atol=1e-3, rtol=1e-3)
    assert jnp.allclose(y, f32_ref(x), atol=2e-2, rtol=2e-2)

    # --- Tiled path: >=2 parallel batch steps + ragged last tile -------------
    B2 = 300
    x2 = jax.random.normal(kx2, (B2, d_in), dtype=jnp.float32)
    y2 = jax.block_until_ready(out_layer(x2, params))
    assert y2.shape == (B2, d_out)
    assert jnp.allclose(y2, bf16_ref(x2), atol=1e-3, rtol=1e-3)
    assert jnp.allclose(y2, f32_ref(x2), atol=2e-2, rtol=2e-2)

    print("KERNEL_OK")
</pallas_src>

<mosaic_0001>
module attributes {stable_mosaic.version = 11 : i64} {
  func.func @outlayer_kernel(%arg0: i32, %arg1: memref<16x32xf32, #tpu.memory_space<vmem>>, %arg2: memref<32x64xbf16, #tpu.memory_space<vmem>>, %arg3: memref<1x64xf32, #tpu.memory_space<vmem>>, %arg4: memref<64x16xbf16, #tpu.memory_space<vmem>>, %arg5: memref<1x16xf32, #tpu.memory_space<vmem>>, %arg6: memref<16x16xf32, #tpu.memory_space<vmem>>) attributes {dimension_semantics = [#tpu.dimension_semantics<parallel>], iteration_bounds = array<i64: 1>, scalar_prefetch = 0 : i64, scratch_operands = 0 : i64, tpu.core_type = #tpu.core_type<tc>, window_params = [{transform_indices = @transform_0, window_bounds = array<i64: 16, 32>}, {pipeline_mode = #tpu.pipeline_mode<synchronous>, transform_indices = @transform_1, window_bounds = array<i64: 32, 64>}, {pipeline_mode = #tpu.pipeline_mode<synchronous>, transform_indices = @transform_2, window_bounds = array<i64: 1, 64>}, {pipeline_mode = #tpu.pipeline_mode<synchronous>, transform_indices = @transform_3, window_bounds = array<i64: 64, 16>}, {pipeline_mode = #tpu.pipeline_mode<synchronous>, transform_indices = @transform_4, window_bounds = array<i64: 1, 16>}, {transform_indices = @transform_5, window_bounds = array<i64: 16, 16>}]} {
    %c0 = arith.constant 0 : index
    %c0_0 = arith.constant 0 : index
    %0 = vector.load %arg1[%c0, %c0_0] : memref<16x32xf32, #tpu.memory_space<vmem>>, vector<16x32xf32>
    %1 = arith.truncf %0 : vector<16x32xf32> to vector<16x32xbf16>
    %c0_1 = arith.constant 0 : index
    %c0_2 = arith.constant 0 : index
    %2 = vector.load %arg2[%c0_1, %c0_2] : memref<32x64xbf16, #tpu.memory_space<vmem>>, vector<32x64xbf16>
    %cst = arith.constant dense<0.000000e+00> : vector<16x64xf32>
    %3 = tpu.matmul %1, %2, %cst {dimension_numbers = #tpu.dot_dimension_numbers<[1], [0], [0], [1], [0, 0, 1, 1], [], []>} : vector<16x32xbf16>, vector<32x64xbf16>, vector<16x64xf32> -> vector<16x64xf32>
    %c0_3 = arith.constant 0 : index
    %c0_4 = arith.constant 0 : index
    %4 = vector.load %arg3[%c0_3, %c0_4] : memref<1x64xf32, #tpu.memory_space<vmem>>, vector<1x64xf32>
    %5 = vector.broadcast %4 : vector<1x64xf32> to vector<16x64xf32>
    %6 = arith.addf %3, %5 : vector<16x64xf32>
    %cst_5 = arith.constant 0.000000e+00 : f32
    %7 = vector.broadcast %cst_5 : f32 to vector<16x64xf32>
    %8 = arith.maximumf %6, %7 : vector<16x64xf32>
    %9 = arith.truncf %8 : vector<16x64xf32> to vector<16x64xbf16>
    %c0_6 = arith.constant 0 : index
    %c0_7 = arith.constant 0 : index
    %10 = vector.load %arg4[%c0_6, %c0_7] : memref<64x16xbf16, #tpu.memory_space<vmem>>, vector<64x16xbf16>
    %cst_8 = arith.constant dense<0.000000e+00> : vector<16x16xf32>
    %11 = tpu.matmul %9, %10, %cst_8 {dimension_numbers = #tpu.dot_dimension_numbers<[1], [0], [0], [1], [0, 0, 1, 1], [], []>} : vector<16x64xbf16>, vector<64x16xbf16>, vector<16x16xf32> -> vector<16x16xf32>
    %c0_9 = arith.constant 0 : index
    %c0_10 = arith.constant 0 : index
    %12 = vector.load %arg5[%c0_9, %c0_10] : memref<1x16xf32, #tpu.memory_space<vmem>>, vector<1x16xf32>
    %13 = vector.broadcast %12 : vector<1x16xf32> to vector<16x16xf32>
    %14 = arith.addf %11, %13 : vector<16x16xf32>
    %c0_11 = arith.constant 0 : index
    %c0_12 = arith.constant 0 : index
    %15 = vector.load %arg6[%c0_11, %c0_12] : memref<16x16xf32, #tpu.memory_space<vmem>>, vector<16x16xf32>
    tpu.vector_store %arg6[%c0_11, %c0_12], %14 {strides = array<i32>} : memref<16x16xf32, #tpu.memory_space<vmem>>, vector<16x16xf32>,
    return
  }
  func.func @transform_0(%arg0: i32) -> (i32, i32) {
    %c0_i32 = arith.constant 0 : i32
    %c0_i32_0 = arith.constant 0 : i32
    return %arg0, %c0_i32 : i32, i32
  }
  func.func @transform_1(%arg0: i32) -> (i32, i32) {
    %c0_i32 = arith.constant 0 : i32
    %c0_i32_0 = arith.constant 0 : i32
    %c0_i32_1 = arith.constant 0 : i32
    return %c0_i32, %c0_i32_0 : i32, i32
  }
  func.func @transform_2(%arg0: i32) -> (i32, i32) {
    %c0_i32 = arith.constant 0 : i32
    %c0_i32_0 = arith.constant 0 : i32
    %c0_i32_1 = arith.constant 0 : i32
    return %c0_i32, %c0_i32_0 : i32, i32
  }
  func.func @transform_3(%arg0: i32) -> (i32, i32) {
    %c0_i32 = arith.constant 0 : i32
    %c0_i32_0 = arith.constant 0 : i32
    %c0_i32_1 = arith.constant 0 : i32
    return %c0_i32, %c0_i32_0 : i32, i32
  }
  func.func @transform_4(%arg0: i32) -> (i32, i32) {
    %c0_i32 = arith.constant 0 : i32
    %c0_i32_0 = arith.constant 0 : i32
    %c0_i32_1 = arith.constant 0 : i32
    return %c0_i32, %c0_i32_0 : i32, i32
  }
  func.func @transform_5(%arg0: i32) -> (i32, i32) {
    %c0_i32 = arith.constant 0 : i32
    %c0_i32_0 = arith.constant 0 : i32
    return %arg0, %c0_i32 : i32, i32
  }
}

module attributes {stable_mosaic.version = 11 : i64} {
  func.func @outlayer_kernel(%arg0: i32, %arg1: memref<16x32xf32, #tpu.memory_space<vmem>>, %arg2: memref<32x64xbf16, #tpu.memory_space<vmem>>, %arg3: memref<1x64xf32, #tpu.memory_space<vmem>>, %arg4: memref<64x16xbf16, #tpu.memory_space<vmem>>, %arg5: memref<1x16xf32, #tpu.memory_space<vmem>>, %arg6: memref<16x16xf32, #tpu.memory_space<vmem>>) attributes {dimension_semantics = [#tpu.dimension_semantics<parallel>], iteration_bounds = array<i64: 1>, scalar_prefetch = 0 : i64, scratch_operands = 0 : i64, tpu.core_type = #tpu.core_type<tc>, window_params = [{transform_indices = @transform_0, window_bounds = array<i64: 16, 32>}, {pipeline_mode = #tpu.pipeline_mode<synchronous>, transform_indices = @transform_1, window_bounds = array<i64: 32, 64>}, {pipeline_mode = #tpu.pipeline_mode<synchronous>, transform_indices = @transform_2, window_bounds = array<i64: 1, 64>}, {pipeline_mode = #tpu.pipeline_mode<synchronous>, transform_indices = @transform_3, window_bounds = array<i64: 64, 16>}, {pipeline_mode = #tpu.pipeline_mode<synchronous>, transform_indices = @transform_4, window_bounds = array<i64: 1, 16>}, {transform_indices = @transform_5, window_bounds = array<i64: 16, 16>}]} {
    %c0 = arith.constant 0 : index
    %c0_0 = arith.constant 0 : index
    %0 = vector.load %arg1[%c0, %c0_0] : memref<16x32xf32, #tpu.memory_space<vmem>>, vector<16x32xf32>
    %1 = arith.truncf %0 : vector<16x32xf32> to vector<16x32xbf16>
    %c0_1 = arith.constant 0 : index
    %c0_2 = arith.constant 0 : index
    %2 = vector.load %arg2[%c0_1, %c0_2] : memref<32x64xbf16, #tpu.memory_space<vmem>>, vector<32x64xbf16>
    %cst = arith.constant dense<0.000000e+00> : vector<16x64xf32>
    %3 = tpu.matmul %1, %2, %cst {dimension_numbers = #tpu.dot_dimension_numbers<[1], [0], [0], [1], [0, 0, 1, 1], [], []>} : vector<16x32xbf16>, vector<32x64xbf16>, vector<16x64xf32> -> vector<16x64xf32>
    %c0_3 = arith.constant 0 : index
    %c0_4 = arith.constant 0 : index
    %4 = vector.load %arg3[%c0_3, %c0_4] : memref<1x64xf32, #tpu.memory_space<vmem>>, vector<1x64xf32>
    %5 = vector.broadcast %4 : vector<1x64xf32> to vector<16x64xf32>
    %6 = arith.addf %3, %5 : vector<16x64xf32>
    %cst_5 = arith.constant 0.000000e+00 : f32
    %7 = vector.broadcast %cst_5 : f32 to vector<16x64xf32>
    %8 = arith.maximumf %6, %7 : vector<16x64xf32>
    %9 = arith.truncf %8 : vector<16x64xf32> to vector<16x64xbf16>
    %c0_6 = arith.constant 0 : index
    %c0_7 = arith.constant 0 : index
    %10 = vector.load %arg4[%c0_6, %c0_7] : memref<64x16xbf16, #tpu.memory_space<vmem>>, vector<64x16xbf16>
    %cst_8 = arith.constant dense<0.000000e+00> : vector<16x16xf32>
    %11 = tpu.matmul %9, %10, %cst_8 {dimension_numbers = #tpu.dot_dimension_numbers<[1], [0], [0], [1], [0, 0, 1, 1], [], []>} : vector<16x64xbf16>, vector<64x16xbf16>, vector<16x16xf32> -> vector<16x16xf32>
    %c0_9 = arith.constant 0 : index
    %c0_10 = arith.constant 0 : index
    %12 = vector.load %arg5[%c0_9, %c0_10] : memref<1x16xf32, #tpu.memory_space<vmem>>, vector<1x16xf32>
    %13 = vector.broadcast %12 : vector<1x16xf32> to vector<16x16xf32>
    %14 = arith.addf %11, %13 : vector<16x16xf32>
    %c0_11 = arith.constant 0 : index
    %c0_12 = arith.constant 0 : index
    %15 = vector.load %arg6[%c0_11, %c0_12] : memref<16x16xf32, #tpu.memory_space<vmem>>, vector<16x16xf32>
    tpu.vector_store %arg6[%c0_11, %c0_12], %14 {strides = array<i32>} : memref<16x16xf32, #tpu.memory_space<vmem>>, vector<16x16xf32>,
    return
  }
  func.func @transform_0(%arg0: i32) -> (i32, i32) {
    %c0_i32 = arith.constant 0 : i32
    %c0_i32_0 = arith.constant 0 : i32
    return %arg0, %c0_i32 : i32, i32
  }
  func.func @transform_1(%arg0: i32) -> (i32, i32) {
    %c0_i32 = arith.constant 0 : i32
    %c0_i32_0 = arith.constant 0 : i32
    %c0_i32_1 = arith.constant 0 : i32
    return %c0_i32, %c0_i32_0 : i32, i32
  }
  func.func @transform_2(%arg0: i32) -> (i32, i32) {
    %c0_i32 = arith.constant 0 : i32
    %c0_i32_0 = arith.constant 0 : i32
    %c0_i32_1 = arith.constant 0 : i32
    return %c0_i32, %c0_i32_0 : i32, i32
  }
  func.func @transform_3(%arg0: i32) -> (i32, i32) {
    %c0_i32 = arith.constant 0 : i32
    %c0_i32_0 = arith.constant 0 : i32
    %c0_i32_1 = arith.constant 0 : i32
    return %c0_i32, %c0_i32_0 : i32, i32
  }
  func.func @transform_4(%arg0: i32) -> (i32, i32) {
    %c0_i32 = arith.constant 0 : i32
    %c0_i32_0 = arith.constant 0 : i32
    %c0_i32_1 = arith.constant 0 : i32
    return %c0_i32, %c0_i32_0 : i32, i32
  }
  func.func @transform_5(%arg0: i32) -> (i32, i32) {
    %c0_i32 = arith.constant 0 : i32
    %c0_i32_0 = arith.constant 0 : i32
    return %arg0, %c0_i32 : i32, i32
  }
}

</mosaic_0001>

<llo_original>
// kernel: tpu_custom_call.1
$region0: #{tpu_custom_call.1}
  #allocation0 [shape = 'u32[]', space=smem, size = 0x4, offset = 0x4, fixed_abs, tag = 'smem constant byte address 0x4 - core index']
  #allocation1 [shape = 'u32[144,128]{1,0:T(1,128)}', space=vmem, size = 0x12000, scoped, tag = 'internal scratch']
  %s0 = inlined_call_operand.vmem [shape: f32[16,32], index: 0, kind: input, shape index: {}]
  %s1 = inlined_call_operand.vmem [shape: bf16[32,64], index: 1, kind: input, shape index: {}]
  %s2 = inlined_call_operand.vmem [shape: f32[1,64], index: 2, kind: input, shape index: {}]
  %s3 = inlined_call_operand.vmem [shape: bf16[64,16], index: 3, kind: input, shape index: {}]
  %s4 = inlined_call_operand.vmem [shape: f32[1,16], index: 4, kind: input, shape index: {}]
  %s5 = inlined_call_operand.hbm [shape: f32[16,16], index: 5, kind: output, shape index: {}]
  %s6 = sld [smem:[#allocation0]]
  $region30: #{tpu_custom_call.1} parent=0
    _
  %s8 = ssub.s32 1, %s6
  %s9 = scalar_select 0, %s8, %s6
  $region1: #{tpu_custom_call.1} parent=0
    #allocation2 [shape = 'u8[8192]{0}', space=vmem, size = 0x2000, scoped, tag = 'output window, operand 0, single buffered']
    #allocation3 [shape = 's32[1]{0}', space=sflag, size = 0x4, scoped, tag = 'scoped memory for tpu_custom_call.1']
    %10 = vsyncpa [#allocation3], 0
    // Predicated region
    $region2: #{tpu_custom_call.1} parent=1 // pred_check
      _
    $region3: #{tpu_custom_call.1} parent=1 // pred_check_branch
      %12 = sbr.rel (0) target = $region5
    $region4: #{tpu_custom_call.1} parent=1 // pred_region
      _
    $region5: #{tpu_custom_call.1} parent=1 // pred_fallthru
      _
    // Predicated region
    $region6: #{tpu_custom_call.1} parent=1 // pred_check
      _
    $region7: #{tpu_custom_call.1} parent=1 // pred_check_branch
      %14 = sbr.rel (0) target = $region9
    $region8: #{tpu_custom_call.1} parent=1 // pred_region
      _
    $region9: #{tpu_custom_call.1} parent=1 // pred_fallthru
      _
    // Predicated region
    $region10: #{tpu_custom_call.1} parent=1 // pred_check
      _
    $region11: #{tpu_custom_call.1} parent=1 // pred_check_branch
      %16 = sbr.rel (0) target = $region13
    $region12: #{tpu_custom_call.1} parent=1 // pred_region
      _
    $region13: #{tpu_custom_call.1} parent=1 // pred_fallthru
      _
    // Predicated region
    $region14: #{tpu_custom_call.1} parent=1 // pred_check
      _
    $region15: #{tpu_custom_call.1} parent=1 // pred_check_branch
      %18 = sbr.rel (0) target = $region17
    $region16: #{tpu_custom_call.1} parent=1 // pred_region
      _
    $region17: #{tpu_custom_call.1} parent=1 // pred_fallthru
      _
    // Predicated region
    $region18: #{tpu_custom_call.1} parent=1 // pred_check
      _
    $region19: #{tpu_custom_call.1} parent=1 // pred_check_branch
      %20 = sbr.rel (0) target = $region21
    $region20: #{tpu_custom_call.1} parent=1 // pred_region
      _
    $region21: #{tpu_custom_call.1} parent=1 // pred_fallthru
      _
    %v22 = vld [vmem:[%s0] sm:$0xff]
    %v23 = vld [vmem:[%s0 + $0x8] sm:$0xff]
    %v24 = vpack.c.bf16 %v23, %v22
    %v25 = vld [vmem:[%s1] sm:$0xf]
    %v26 = vld [vmem:[%s1 + $0x4] sm:$0xf]
    %v27 = vld [vmem:[%s1 + $0x8] sm:$0xf]
    %v28 = vld [vmem:[%s1 + $0xc] sm:$0xf]
    %v29 = vld [vmem:[%s2] sm:$0x1]
    %v31 = vlaneseq
    %v32 = vshrl.u32 %v31, 7
    %v33 = vsub.s32 0, %v32
    %v34 = vrot.slane %v29, %v33
    %v40 = vunpack.c.l.b16 %v25
    %v41 = vunpack.c.l.b16 %v26
    %v42 = vunpack.c.l.b16 %v27
    %v43 = vunpack.c.l.b16 %v28
    %v44 = vpack.c.b16 %v41, %v40
    %v45 = vpack.c.b16 %v43, %v42
    %vm48 = vcmask 261120
    %v50 = vsel %vm48, %v24, 0
    %52 = vmatprep.subr.bf16.mxu0 0
    %53 = vmatpush1.bf16.msra.mxu0 0
    %54 = vmatprep.subr.bf16.mxu0 0
    %55 = vmatpush1.bf16.msra.mxu0 0
    %56 = vmatprep.subr.bf16.mxu0 0
    %57 = vmatpush1.bf16.msra.mxu0 0
    %58 = vmatprep.subr.bf16.mxu0 0
    %59 = vmatpush1.bf16.msra.mxu0 0
    %60 = vmatprep.subr.bf16.mxu0 0
    %61 = vmatpush1.bf16.msra.mxu0 0
    %62 = vmatprep.subr.bf16.mxu0 0
    %63 = vmatpush1.bf16.msra.mxu0 0
    %64 = vmatprep.subr.bf16.mxu0 0
    %65 = vmatpush1.bf16.msra.mxu0 %v45
    %66 = vmatprep.subr.bf16.mxu0 0
    %67 = vmatpush1.bf16.msra.mxu0 %v44
    %68 = vmatprep.subr.bf16.mxu0 0
    %69 = vmatpush2.bf16.msra.mxu0 0
    %70 = vmatprep.subr.bf16.mxu0 0
    %71 = vmatpush2.bf16.msra.mxu0 0
    %72 = vmatprep.subr.bf16.mxu0 0
    %73 = vmatpush2.bf16.msra.mxu0 0
    %74 = vmatprep.subr.bf16.mxu0 0
    %75 = vmatpush2.bf16.msra.mxu0 0
    %76 = vmatprep.subr.bf16.mxu0 0
    %77 = vmatpush2.bf16.msra.mxu0 0
    %78 = vmatprep.subr.bf16.mxu0 0
    %79 = vmatpush2.bf16.msra.mxu0 0
    %80 = vmatprep.subr.bf16.mxu0 0
    %81 = vmatpush2.bf16.msra.mxu0 0
    %82 = vmatprep.subr.bf16.mxu0 0
    %83 = vmatpush2.bf16.msra.mxu0 0
    %84 = vmatprep.mubr.bf16.mxu0 0
    %85 = vmatmul.mubr.bf16.gmra.mxu0 %v50
    %v86 = vpop.f32.mrf.mxu0
    %v87 = vadd.f32 %v34, %v86
    %v88 = vpop.f32.mrf.mxu0
    %v89 = vpop.f32.mrf.mxu0
    %v90 = vadd.f32 %v34, %v89
    %v91 = vpop.f32.mrf.mxu0
    %92 = vdwg.mxu0
    %v93 = vmax.f32 %v87, 0.0
    %v94 = vmax.f32 %v90, 0.0
    %v95 = vpack.c.bf16 %v94, %v93
    %v96 = vld [vmem:[%s3] sm:$0xf]
    %v97 = vld [vmem:[%s3 + $0x4] sm:$0xf]
    %v98 = vld [vmem:[%s3 + $0x8] sm:$0xf]
    %v99 = vld [vmem:[%s3 + $0xc] sm:$0xf]
    %v100 = vld [vmem:[%s3 + $0x10] sm:$0xf]
    %v101 = vld [vmem:[%s3 + $0x14] sm:$0xf]
    %v102 = vld [vmem:[%s3 + $0x18] sm:$0xf]
    %v103 = vld [vmem:[%s3 + $0x1c] sm:$0xf]
    %v104 = vld [vmem:[%s4] sm:$0x1]
    %v106 = vlaneseq
    %v107 = vshrl.u32 %v106, 7
    %v108 = vsub.s32 0, %v107
    %v109 = vrot.slane %v104, %v108
    %v119 = vunpack.c.l.b16 %v96
    %v120 = vunpack.c.l.b16 %v97
    %v121 = vunpack.c.l.b16 %v98
    %v122 = vunpack.c.l.b16 %v99
    %v123 = vunpack.c.l.b16 %v100
    %v124 = vunpack.c.l.b16 %v101
    %v125 = vunpack.c.l.b16 %v102
    %v126 = vunpack.c.l.b16 %v103
    %v127 = vpack.c.b16 %v120, %v119
    %v128 = vpack.c.b16 %v122, %v121
    %v129 = vpack.c.b16 %v124, %v123
    %v130 = vpack.c.b16 %v126, %v125
    %vm135 = vcmask 523264
    %v137 = vsel %vm135, %v95, 0
    %139 = vmatprep.subr.bf16.mxu0 0
    %140 = vmatpush1.bf16.msra.mxu0 0
    %141 = vmatprep.subr.bf16.mxu0 0
    %142 = vmatpush1.bf16.msra.mxu0 0
    %143 = vmatprep.subr.bf16.mxu0 0
    %144 = vmatpush1.bf16.msra.mxu0 0
    %145 = vmatprep.subr.bf16.mxu0 0
    %146 = vmatpush1.bf16.msra.mxu0 0
    %147 = vmatprep.subr.bf16.mxu0 0
    %148 = vmatpush1.bf16.msra.mxu0 %v130
    %149 = vmatprep.subr.bf16.mxu0 0
    %150 = vmatpush1.bf16.msra.mxu0 %v129
    %151 = vmatprep.subr.bf16.mxu0 0
    %152 = vmatpush1.bf16.msra.mxu0 %v128
    %153 = vmatprep.subr.bf16.mxu0 0
    %154 = vmatpush1.bf16.msra.mxu0 %v127
    %155 = vmatprep.subr.bf16.mxu0 0
    %156 = vmatpush2.bf16.msra.mxu0 0
    %157 = vmatprep.subr.bf16.mxu0 0
    %158 = vmatpush2.bf16.msra.mxu0 0
    %159 = vmatprep.subr.bf16.mxu0 0
    %160 = vmatpush2.bf16.msra.mxu0 0
    %161 = vmatprep.subr.bf16.mxu0 0
    %162 = vmatpush2.bf16.msra.mxu0 0
    %163 = vmatprep.subr.bf16.mxu0 0
    %164 = vmatpush2.bf16.msra.mxu0 0
    %165 = vmatprep.subr.bf16.mxu0 0
    %166 = vmatpush2.bf16.msra.mxu0 0
    %167 = vmatprep.subr.bf16.mxu0 0
    %168 = vmatpush2.bf16.msra.mxu0 0
    %169 = vmatprep.subr.bf16.mxu0 0
    %170 = vmatpush2.bf16.msra.mxu0 0
    %171 = vmatprep.mubr.bf16.mxu0 0
    %172 = vmatmul.mubr.bf16.gmra.mxu0 %v137
    %v173 = vpop.f32.mrf.mxu0
    %v174 = vadd.f32 %v109, %v173
    %v175 = vpop.f32.mrf.mxu0
    %v176 = vpop.f32.mrf.mxu0
    %v177 = vadd.f32 %v109, %v176
    %v178 = vpop.f32.mrf.mxu0
    %179 = vdwg.mxu0
    %vm180 = vcmask 130048
    %181 = vst.msk [vmem:[#allocation2] sm:$0xff] %vm180, %v174
    %182 = vst.msk [vmem:[#allocation2 + $0x8] sm:$0xff] %vm180, %v177
    // Predicated region
    $region22: #{tpu_custom_call.1} parent=1 // pred_check
      _
    $region23: #{tpu_custom_call.1} parent=1 // pred_check_branch
      %184 = sbr.rel (0) target = $region25
    $region24: #{tpu_custom_call.1} parent=1 // pred_region
      %s186 = ssub.s32 256, 256
      %187 = vsyncadd [#allocation3], %s186
      %s188 = sshll.u32 [#allocation2], 4
      %s189 = int_to_ptr.vmem [resolvable:$true] %s188
      %194 = dma.vmem_to_hbm [thread:$0]  %s189, 256, %s5, [#allocation3], 128, 128, 8
    $region25: #{tpu_custom_call.1} parent=1 // pred_fallthru
      _
    // Predicated region
    $region26: #{tpu_custom_call.1} parent=1 // pred_check
      _
    $region27: #{tpu_custom_call.1} parent=1 // pred_check_branch
      %196 = sbr.rel (0) target = $region29
    $region28: #{tpu_custom_call.1} parent=1 // pred_region
      %197 = dma.done [#allocation3], 256
    $region29: #{tpu_custom_call.1} parent=1 // pred_fallthru
      _
    %198 = vsyncpa [#allocation3], 1

// kernel: tpu_custom_call.1
$region0: #{tpu_custom_call.1}
  #allocation0 [shape = 'u32[]', space=smem, size = 0x4, offset = 0x4, fixed_abs, tag = 'smem constant byte address 0x4 - core index']
  #allocation1 [shape = 'u32[144,128]{1,0:T(1,128)}', space=vmem, size = 0x12000, scoped, tag = 'internal scratch']
  %s0 = inlined_call_operand.vmem [shape: f32[16,32], index: 0, kind: input, shape index: {}]
  %s1 = inlined_call_operand.vmem [shape: bf16[32,64], index: 1, kind: input, shape index: {}]
  %s2 = inlined_call_operand.vmem [shape: f32[1,64], index: 2, kind: input, shape index: {}]
  %s3 = inlined_call_operand.vmem [shape: bf16[64,16], index: 3, kind: input, shape index: {}]
  %s4 = inlined_call_operand.vmem [shape: f32[1,16], index: 4, kind: input, shape index: {}]
  %s5 = inlined_call_operand.hbm [shape: f32[16,16], index: 5, kind: output, shape index: {}]
  %s6 = sld [smem:[#allocation0]]
  $region30: #{tpu_custom_call.1} parent=0
    _
  %s8 = ssub.s32 1, %s6
  %s9 = scalar_select 0, %s8, %s6
  $region1: #{tpu_custom_call.1} parent=0
    #allocation2 [shape = 'u8[8192]{0}', space=vmem, size = 0x2000, scoped, tag = 'output window, operand 0, single buffered']
    #allocation3 [shape = 's32[1]{0}', space=sflag, size = 0x4, scoped, tag = 'scoped memory for tpu_custom_call.1']
    %10 = vsyncpa [#allocation3], 0
    // Predicated region
    $region2: #{tpu_custom_call.1} parent=1 // pred_check
      _
    $region3: #{tpu_custom_call.1} parent=1 // pred_check_branch
      %12 = sbr.rel (0) target = $region5
    $region4: #{tpu_custom_call.1} parent=1 // pred_region
      _
    $region5: #{tpu_custom_call.1} parent=1 // pred_fallthru
      _
    // Predicated region
    $region6: #{tpu_custom_call.1} parent=1 // pred_check
      _
    $region7: #{tpu_custom_call.1} parent=1 // pred_check_branch
      %14 = sbr.rel (0) target = $region9
    $region8: #{tpu_custom_call.1} parent=1 // pred_region
      _
    $region9: #{tpu_custom_call.1} parent=1 // pred_fallthru
      _
    // Predicated region
    $region10: #{tpu_custom_call.1} parent=1 // pred_check
      _
    $region11: #{tpu_custom_call.1} parent=1 // pred_check_branch
      %16 = sbr.rel (0) target = $region13
    $region12: #{tpu_custom_call.1} parent=1 // pred_region
      _
    $region13: #{tpu_custom_call.1} parent=1 // pred_fallthru
      _
    // Predicated region
    $region14: #{tpu_custom_call.1} parent=1 // pred_check
      _
    $region15: #{tpu_custom_call.1} parent=1 // pred_check_branch
      %18 = sbr.rel (0) target = $region17
    $region16: #{tpu_custom_call.1} parent=1 // pred_region
      _
    $region17: #{tpu_custom_call.1} parent=1 // pred_fallthru
      _
    // Predicated region
    $region18: #{tpu_custom_call.1} parent=1 // pred_check
      _
    $region19: #{tpu_custom_call.1} parent=1 // pred_check_branch
      %20 = sbr.rel (0) target = $region21
    $region20: #{tpu_custom_call.1} parent=1 // pred_region
      _
    $region21: #{tpu_custom_call.1} parent=1 // pred_fallthru
      _
    %v22 = vld [vmem:[%s0] sm:$0xff]
    %v23 = vld [vmem:[%s0 + $0x8] sm:$0xff]
    %v24 = vpack.c.bf16 %v23, %v22
    %v25 = vld [vmem:[%s1] sm:$0xf]
    %v26 = vld [vmem:[%s1 + $0x4] sm:$0xf]
    %v27 = vld [vmem:[%s1 + $0x8] sm:$0xf]
    %v28 = vld [vmem:[%s1 + $0xc] sm:$0xf]
    %v29 = vld [vmem:[%s2] sm:$0x1]
    %v31 = vlaneseq
    %v32 = vshrl.u32 %v31, 7
    %v33 = vsub.s32 0, %v32
    %v34 = vrot.slane %v29, %v33
    %v40 = vunpack.c.l.b16 %v25
    %v41 = vunpack.c.l.b16 %v26
    %v42 = vunpack.c.l.b16 %v27
    %v43 = vunpack.c.l.b16 %v28
    %v44 = vpack.c.b16 %v41, %v40
    %v45 = vpack.c.b16 %v43, %v42
    %vm48 = vcmask 261120
    %v50 = vsel %vm48, %v24, 0
    %52 = vmatprep.subr.bf16.mxu0 0
    %53 = vmatpush1.bf16.msra.mxu0 0
    %54 = vmatprep.subr.bf16.mxu0 0
    %55 = vmatpush1.bf16.msra.mxu0 0
    %56 = vmatprep.subr.bf16.mxu0 0
    %57 = vmatpush1.bf16.msra.mxu0 0
    %58 = vmatprep.subr.bf16.mxu0 0
    %59 = vmatpush1.bf16.msra.mxu0 0
    %60 = vmatprep.subr.bf16.mxu0 0
    %61 = vmatpush1.bf16.msra.mxu0 0
    %62 = vmatprep.subr.bf16.mxu0 0
    %63 = vmatpush1.bf16.msra.mxu0 0
    %64 = vmatprep.subr.bf16.mxu0 0
    %65 = vmatpush1.bf16.msra.mxu0 %v45
    %66 = vmatprep.subr.bf16.mxu0 0
    %67 = vmatpush1.bf16.msra.mxu0 %v44
    %68 = vmatprep.subr.bf16.mxu0 0
    %69 = vmatpush2.bf16.msra.mxu0 0
    %70 = vmatprep.subr.bf16.mxu0 0
    %71 = vmatpush2.bf16.msra.mxu0 0
    %72 = vmatprep.subr.bf16.mxu0 0
    %73 = vmatpush2.bf16.msra.mxu0 0
    %74 = vmatprep.subr.bf16.mxu0 0
    %75 = vmatpush2.bf16.msra.mxu0 0
    %76 = vmatprep.subr.bf16.mxu0 0
    %77 = vmatpush2.bf16.msra.mxu0 0
    %78 = vmatprep.subr.bf16.mxu0 0
    %79 = vmatpush2.bf16.msra.mxu0 0
    %80 = vmatprep.subr.bf16.mxu0 0
    %81 = vmatpush2.bf16.msra.mxu0 0
    %82 = vmatprep.subr.bf16.mxu0 0
    %83 = vmatpush2.bf16.msra.mxu0 0
    %84 = vmatprep.mubr.bf16.mxu0 0
    %85 = vmatmul.mubr.bf16.gmra.mxu0 %v50
    %v86 = vpop.f32.mrf.mxu0
    %v87 = vadd.f32 %v34, %v86
    %v88 = vpop.f32.mrf.mxu0
    %v89 = vpop.f32.mrf.mxu0
    %v90 = vadd.f32 %v34, %v89
    %v91 = vpop.f32.mrf.mxu0
    %92 = vdwg.mxu0
    %v93 = vmax.f32 %v87, 0.0
    %v94 = vmax.f32 %v90, 0.0
    %v95 = vpack.c.bf16 %v94, %v93
    %v96 = vld [vmem:[%s3] sm:$0xf]
    %v97 = vld [vmem:[%s3 + $0x4] sm:$0xf]
    %v98 = vld [vmem:[%s3 + $0x8] sm:$0xf]
    %v99 = vld [vmem:[%s3 + $0xc] sm:$0xf]
    %v100 = vld [vmem:[%s3 + $0x10] sm:$0xf]
    %v101 = vld [vmem:[%s3 + $0x14] sm:$0xf]
    %v102 = vld [vmem:[%s3 + $0x18] sm:$0xf]
    %v103 = vld [vmem:[%s3 + $0x1c] sm:$0xf]
    %v104 = vld [vmem:[%s4] sm:$0x1]
    %v106 = vlaneseq
    %v107 = vshrl.u32 %v106, 7
    %v108 = vsub.s32 0, %v107
    %v109 = vrot.slane %v104, %v108
    %v119 = vunpack.c.l.b16 %v96
    %v120 = vunpack.c.l.b16 %v97
    %v121 = vunpack.c.l.b16 %v98
    %v122 = vunpack.c.l.b16 %v99
    %v123 = vunpack.c.l.b16 %v100
    %v124 = vunpack.c.l.b16 %v101
    %v125 = vunpack.c.l.b16 %v102
    %v126 = vunpack.c.l.b16 %v103
    %v127 = vpack.c.b16 %v120, %v119
    %v128 = vpack.c.b16 %v122, %v121
    %v129 = vpack.c.b16 %v124, %v123
    %v130 = vpack.c.b16 %v126, %v125
    %vm135 = vcmask 523264
    %v137 = vsel %vm135, %v95, 0
    %139 = vmatprep.subr.bf16.mxu0 0
    %140 = vmatpush1.bf16.msra.mxu0 0
    %141 = vmatprep.subr.bf16.mxu0 0
    %142 = vmatpush1.bf16.msra.mxu0 0
    %143 = vmatprep.subr.bf16.mxu0 0
    %144 = vmatpush1.bf16.msra.mxu0 0
    %145 = vmatprep.subr.bf16.mxu0 0
    %146 = vmatpush1.bf16.msra.mxu0 0
    %147 = vmatprep.subr.bf16.mxu0 0
    %148 = vmatpush1.bf16.msra.mxu0 %v130
    %149 = vmatprep.subr.bf16.mxu0 0
    %150 = vmatpush1.bf16.msra.mxu0 %v129
    %151 = vmatprep.subr.bf16.mxu0 0
    %152 = vmatpush1.bf16.msra.mxu0 %v128
    %153 = vmatprep.subr.bf16.mxu0 0
    %154 = vmatpush1.bf16.msra.mxu0 %v127
    %155 = vmatprep.subr.bf16.mxu0 0
    %156 = vmatpush2.bf16.msra.mxu0 0
    %157 = vmatprep.subr.bf16.mxu0 0
    %158 = vmatpush2.bf16.msra.mxu0 0
    %159 = vmatprep.subr.bf16.mxu0 0
    %160 = vmatpush2.bf16.msra.mxu0 0
    %161 = vmatprep.subr.bf16.mxu0 0
    %162 = vmatpush2.bf16.msra.mxu0 0
    %163 = vmatprep.subr.bf16.mxu0 0
    %164 = vmatpush2.bf16.msra.mxu0 0
    %165 = vmatprep.subr.bf16.mxu0 0
    %166 = vmatpush2.bf16.msra.mxu0 0
    %167 = vmatprep.subr.bf16.mxu0 0
    %168 = vmatpush2.bf16.msra.mxu0 0
    %169 = vmatprep.subr.bf16.mxu0 0
    %170 = vmatpush2.bf16.msra.mxu0 0
    %171 = vmatprep.mubr.bf16.mxu0 0
    %172 = vmatmul.mubr.bf16.gmra.mxu0 %v137
    %v173 = vpop.f32.mrf.mxu0
    %v174 = vadd.f32 %v109, %v173
    %v175 = vpop.f32.mrf.mxu0
    %v176 = vpop.f32.mrf.mxu0
    %v177 = vadd.f32 %v109, %v176
    %v178 = vpop.f32.mrf.mxu0
    %179 = vdwg.mxu0
    %vm180 = vcmask 130048
    %181 = vst.msk [vmem:[#allocation2] sm:$0xff] %vm180, %v174
    %182 = vst.msk [vmem:[#allocation2 + $0x8] sm:$0xff] %vm180, %v177
    // Predicated region
    $region22: #{tpu_custom_call.1} parent=1 // pred_check
      _
    $region23: #{tpu_custom_call.1} parent=1 // pred_check_branch
      %184 = sbr.rel (0) target = $region25
    $region24: #{tpu_custom_call.1} parent=1 // pred_region
      %s186 = ssub.s32 256, 256
      %187 = vsyncadd [#allocation3], %s186
      %s188 = sshll.u32 [#allocation2], 4
      %s189 = int_to_ptr.vmem [resolvable:$true] %s188
      %194 = dma.vmem_to_hbm [thread:$0]  %s189, 256, %s5, [#allocation3], 128, 128, 8
    $region25: #{tpu_custom_call.1} parent=1 // pred_fallthru
      _
    // Predicated region
    $region26: #{tpu_custom_call.1} parent=1 // pred_check
      _
    $region27: #{tpu_custom_call.1} parent=1 // pred_check_branch
      %196 = sbr.rel (0) target = $region29
    $region28: #{tpu_custom_call.1} parent=1 // pred_region
      %197 = dma.done [#allocation3], 256
    $region29: #{tpu_custom_call.1} parent=1 // pred_fallthru
      _
    %198 = vsyncpa [#allocation3], 1

</llo_original>
